<compile_context>
chip_gen: v7x
topology: tpu7x:2x2x1
jax: 0.10.0
libtpu: 0.0.40
codegen_flags: <defaults>
</compile_context>

<pallas_src>
import functools

import jax
import jax.numpy as jnp
from jax import lax
from jax.experimental import pallas as pl
from jax.experimental.pallas import tpu as pltpu


LANE = 128
BN_EPS = 1e-5
LEAKY_SLOPE = 0.2
WEIGHT_DTYPE = jnp.bfloat16  # MXU-native feed dtype; accumulation stays f32.


def _round_up(x: int, m: int) -> int:
    return (x + m - 1) // m * m


def make_generator_kernel(n_layers: int):
    """Linear -> LeakyReLU, [Linear -> BN -> LeakyReLU]*, Linear -> Tanh
    (VEEGAN Generator forward, training-mode BatchNorm, gamma=1 / beta=0)."""

    def kernel(*refs):
        z_ref = refs[0]
        w_refs = refs[1:1 + n_layers]
        b_refs = refs[1 + n_layers:1 + 2 * n_layers]
        out_ref = refs[-1]

        # Noise column already folded into the lane-dense (B, P0) input slab.
        h = z_ref[...]
        for i in range(n_layers):
            w = w_refs[i][...]                                  # (P_in, P_out) bf16
            h = jnp.dot(h.astype(w.dtype), w,
                        preferred_element_type=jnp.float32)     # f32 accumulate
            h = h + b_refs[i][...]                              # f32 bias epilogue
            if i == n_layers - 1:
                out_ref[...] = jnp.tanh(h)                      # lane-dense store
            else:
                if i > 0:
                    # BatchNorm1d, training mode (batch stats), gamma=1, beta=0.
                    # One-pass stats; zero-padded lanes stay exactly zero.
                    m = jnp.mean(h, axis=0, keepdims=True)
                    ms = jnp.mean(h * h, axis=0, keepdims=True)
                    h = (h - m) * lax.rsqrt(ms - m * m + BN_EPS)
                h = jnp.maximum(h, LEAKY_SLOPE * h)             # LeakyReLU(0.2)
        # TODO(synk): running-mean/var updates and learnable gamma/beta are not
        # implemented (matches the PyTorch module at init, training-mode norm).

    return kernel


def init_generator_params(key, z_dim: int, data_dim: int, ngfs):
    """Matches weights_init + PyTorch defaults:
    Linear.weight ~ N(0, 0.02) (stored transposed as (in, out)),
    Linear.bias ~ U(-1/sqrt(fan_in), 1/sqrt(fan_in))."""
    params = []
    last_dim = z_dim + 1
    for d in list(ngfs) + [data_dim]:
        key, kw, kb = jax.random.split(key, 3)
        w = 0.02 * jax.random.normal(kw, (last_dim, d), dtype=jnp.float32)
        bound = 1.0 / jnp.sqrt(jnp.float32(last_dim))
        b = jax.random.uniform(kb, (1, d), minval=-bound, maxval=bound,
                               dtype=jnp.float32)
        params.append((w, b))
        last_dim = d
    return params


def pad_params_per_layer(params, weight_dtype=WEIGHT_DTYPE):
    """Zero-pad each layer only to its OWN lane-aligned shape:
    W_i -> (round_up(in_i,128), round_up(out_i,128)) cast to `weight_dtype`,
    b_i -> (1, round_up(out_i,128)) kept in f32.
    The zero-fill invariant is what keeps padded lanes exactly zero in-kernel."""
    ws, bs = [], []
    for w, b in params:
        pin = _round_up(w.shape[0], LANE)
        pout = _round_up(w.shape[1], LANE)
        wp = jnp.zeros((pin, pout), jnp.float32).at[: w.shape[0], : w.shape[1]].set(w)
        bp = jnp.zeros((1, pout), jnp.float32).at[:, : b.shape[1]].set(b)
        ws.append(wp.astype(weight_dtype))
        bs.append(bp)
    return ws, bs


def _vmem_limit_bytes(batch, ws, bs, in_pad, out_pad):
    """Static VMEM budget: resident weights/biases + I/O slabs + activation temps."""
    wbytes = sum(int(w.size) * w.dtype.itemsize for w in ws)
    bbytes = sum(int(b.size) * b.dtype.itemsize for b in bs)
    max_p = max([in_pad, out_pad] + [int(w.shape[1]) for w in ws])
    act_bytes = batch * max_p * 4 * 8            # generous: f32 h, bf16 feed, BN temps
    io_bytes = batch * (in_pad + out_pad) * 4
    need = 2 * (wbytes + bbytes + io_bytes) + act_bytes + (4 << 20)
    return int(min(max(need, 32 << 20), 112 << 20))


def generator_forward(Z, noise, ws, bs, *, data_dim: int, return_padded: bool = False):
    batch = Z.shape[0]
    n_layers = len(ws)
    in_pad = ws[0].shape[0]
    out_pad = ws[-1].shape[1]

    # Fold the noise column into Z and zero-pad once (tiny XLA pad) so layer 0
    # sees the same lane-dense matmul shape as every other layer.
    zn = jnp.concatenate([Z, noise], axis=1)
    z_slab = jnp.pad(zn, ((0, 0), (0, in_pad - zn.shape[1])))

    kernel = make_generator_kernel(n_layers)
    n_inputs = 1 + 2 * n_layers
    out_padded = pl.pallas_call(
        kernel,
        out_shape=jax.ShapeDtypeStruct((batch, out_pad), jnp.float32),
        in_specs=[pl.BlockSpec(memory_space=pltpu.MemorySpace.VMEM)] * n_inputs,
        out_specs=pl.BlockSpec(memory_space=pltpu.MemorySpace.VMEM),
        compiler_params=pltpu.CompilerParams(
            vmem_limit_bytes=_vmem_limit_bytes(batch, ws, bs, in_pad, out_pad)),
    )(z_slab, *ws, *bs)

    if return_padded:
        # Let a fused downstream consumer read the lane-dense slab directly and
        # avoid the extra XLA slice copy.
        return out_padded
    return out_padded[:, :data_dim]


def generator_reference(Z, noise, params, n_hidden: int):
    """Pure-JAX reference of the PyTorch module (for correctness check)."""
    h = jnp.concatenate([Z, noise], axis=1)
    for i in range(n_hidden):
        w, b = params[i]
        h = h @ w + b
        if i > 0:
            m = jnp.mean(h, axis=0, keepdims=True)
            v = jnp.mean((h - m) ** 2, axis=0, keepdims=True)
            h = (h - m) * lax.rsqrt(v + BN_EPS)
        h = jnp.where(h > 0, h, LEAKY_SLOPE * h)
    w, b = params[-1]
    return jnp.tanh(h @ w + b)


if __name__ == "__main__":
    # Batch of 256 so the MXU sees full-height LHS tiles and the single
    # pallas_call dispatch is amortized (per perf review); feature dims stay
    # at the small module-consistent sizes.
    batch = 256
    z_dim = 8
    data_dim = 16
    ngfs = [32, 32]
    n_layers = len(ngfs) + 1

    key = jax.random.PRNGKey(0)
    kz, kn, kp = jax.random.split(key, 3)

    Z = jax.random.normal(kz, (batch, z_dim), dtype=jnp.float32)
    # torch.randn((Z.shape[0], 1)) equivalent; passed in (not drawn in-kernel)
    # so the forward stays a deterministic function of its inputs.
    noise = jax.random.normal(kn, (batch, 1), dtype=jnp.float32)

    params = init_generator_params(kp, z_dim, data_dim, ngfs)
    ws, bs = pad_params_per_layer(params, weight_dtype=WEIGHT_DTYPE)

    fwd = jax.jit(functools.partial(generator_forward, data_dim=data_dim,
                                    return_padded=True))
    out_padded = jax.block_until_ready(fwd(Z, noise, ws, bs))

    assert out_padded.shape == (batch, _round_up(data_dim, LANE))
    # Zero-padding invariant: unused lanes of the padded output slab must be 0.
    assert bool(jnp.all(out_padded[:, data_dim:] == 0.0))

    out = out_padded[:, :data_dim]
    assert out.shape == (batch, data_dim)
    assert bool(jnp.all(jnp.isfinite(out)))
    assert bool(jnp.all(jnp.abs(out) <= 1.0))   # tanh output range

    # Reference uses the same bf16-rounded weights but f32 activations, so the
    # only extra error in the kernel is bf16 rounding of the MXU activation
    # feeds -> relaxed tolerance vs the previous pure-f32 check.
    ref_params = [
        (wp.astype(jnp.float32)[: w.shape[0], : w.shape[1]], b)
        for (w, b), wp in zip(params, ws)
    ]
    ref = generator_reference(Z, noise, ref_params, n_hidden=len(ngfs))
    max_err = float(jnp.max(jnp.abs(out - ref)))
    assert bool(jnp.allclose(out, ref, atol=2e-2, rtol=0.0)), max_err

    print("KERNEL_OK")
</pallas_src>

<mosaic_0001>
module attributes {stable_mosaic.version = 11 : i64} {
  func.func @kernel(%arg0: memref<256x128xf32, #tpu.memory_space<vmem>>, %arg1: memref<128x128xbf16, #tpu.memory_space<vmem>>, %arg2: memref<128x128xbf16, #tpu.memory_space<vmem>>, %arg3: memref<128x128xbf16, #tpu.memory_space<vmem>>, %arg4: memref<1x128xf32, #tpu.memory_space<vmem>>, %arg5: memref<1x128xf32, #tpu.memory_space<vmem>>, %arg6: memref<1x128xf32, #tpu.memory_space<vmem>>, %arg7: memref<256x128xf32, #tpu.memory_space<vmem>>) attributes {dimension_semantics = [], scalar_prefetch = 0 : i64, scratch_operands = 0 : i64, tpu.core_type = #tpu.core_type<tc>} {
    %c0 = arith.constant 0 : index
    %c0_0 = arith.constant 0 : index
    %0 = vector.load %arg0[%c0, %c0_0] : memref<256x128xf32, #tpu.memory_space<vmem>>, vector<256x128xf32>
    %c0_1 = arith.constant 0 : index
    %c0_2 = arith.constant 0 : index
    %1 = vector.load %arg1[%c0_1, %c0_2] : memref<128x128xbf16, #tpu.memory_space<vmem>>, vector<128x128xbf16>
    %2 = arith.truncf %0 : vector<256x128xf32> to vector<256x128xbf16>
    %cst = arith.constant dense<0.000000e+00> : vector<256x128xf32>
    %3 = tpu.matmul %2, %1, %cst {dimension_numbers = #tpu.dot_dimension_numbers<[1], [0], [0], [1], [0, 0, 1, 1], [], []>} : vector<256x128xbf16>, vector<128x128xbf16>, vector<256x128xf32> -> vector<256x128xf32>
    %c0_3 = arith.constant 0 : index
    %c0_4 = arith.constant 0 : index
    %4 = vector.load %arg4[%c0_3, %c0_4] : memref<1x128xf32, #tpu.memory_space<vmem>>, vector<1x128xf32>
    %5 = vector.broadcast %4 : vector<1x128xf32> to vector<256x128xf32>
    %6 = arith.addf %3, %5 : vector<256x128xf32>
    %cst_5 = arith.constant 2.000000e-01 : f32
    %7 = vector.broadcast %cst_5 : f32 to vector<256x128xf32>
    %8 = arith.mulf %7, %6 : vector<256x128xf32>
    %9 = arith.maximumf %6, %8 : vector<256x128xf32>
    %c0_6 = arith.constant 0 : index
    %c0_7 = arith.constant 0 : index
    %10 = vector.load %arg2[%c0_6, %c0_7] : memref<128x128xbf16, #tpu.memory_space<vmem>>, vector<128x128xbf16>
    %11 = arith.truncf %9 : vector<256x128xf32> to vector<256x128xbf16>
    %cst_8 = arith.constant dense<0.000000e+00> : vector<256x128xf32>
    %12 = tpu.matmul %11, %10, %cst_8 {dimension_numbers = #tpu.dot_dimension_numbers<[1], [0], [0], [1], [0, 0, 1, 1], [], []>} : vector<256x128xbf16>, vector<128x128xbf16>, vector<256x128xf32> -> vector<256x128xf32>
    %c0_9 = arith.constant 0 : index
    %c0_10 = arith.constant 0 : index
    %13 = vector.load %arg5[%c0_9, %c0_10] : memref<1x128xf32, #tpu.memory_space<vmem>>, vector<1x128xf32>
    %14 = vector.broadcast %13 : vector<1x128xf32> to vector<256x128xf32>
    %15 = arith.addf %12, %14 : vector<256x128xf32>
    %cst_11 = arith.constant dense<0.000000e+00> : vector<128xf32>
    %16 = vector.multi_reduction <add>, %15, %cst_11 [0] : vector<256x128xf32> to vector<128xf32>
    %17 = vector.shape_cast %16 : vector<128xf32> to vector<1x128xf32>
    %cst_12 = arith.constant 2.560000e+02 : f32
    %18 = vector.broadcast %cst_12 : f32 to vector<1x128xf32>
    %19 = arith.divf %17, %18 : vector<1x128xf32>
    %20 = arith.mulf %15, %15 : vector<256x128xf32>
    %cst_13 = arith.constant dense<0.000000e+00> : vector<128xf32>
    %21 = vector.multi_reduction <add>, %20, %cst_13 [0] : vector<256x128xf32> to vector<128xf32>
    %22 = vector.shape_cast %21 : vector<128xf32> to vector<1x128xf32>
    %cst_14 = arith.constant 2.560000e+02 : f32
    %23 = vector.broadcast %cst_14 : f32 to vector<1x128xf32>
    %24 = arith.divf %22, %23 : vector<1x128xf32>
    %25 = vector.broadcast %19 : vector<1x128xf32> to vector<256x128xf32>
    %26 = arith.subf %15, %25 : vector<256x128xf32>
    %27 = arith.mulf %19, %19 : vector<1x128xf32>
    %28 = arith.subf %24, %27 : vector<1x128xf32>
    %cst_15 = arith.constant 9.99999974E-6 : f32
    %29 = vector.broadcast %cst_15 : f32 to vector<1x128xf32>
    %30 = arith.addf %28, %29 : vector<1x128xf32>
    %31 = math.rsqrt %30 : vector<1x128xf32>
    %32 = vector.broadcast %31 : vector<1x128xf32> to vector<256x128xf32>
    %33 = arith.mulf %26, %32 : vector<256x128xf32>
    %cst_16 = arith.constant 2.000000e-01 : f32
    %34 = vector.broadcast %cst_16 : f32 to vector<256x128xf32>
    %35 = arith.mulf %34, %33 : vector<256x128xf32>
    %36 = arith.maximumf %33, %35 : vector<256x128xf32>
    %c0_17 = arith.constant 0 : index
    %c0_18 = arith.constant 0 : index
    %37 = vector.load %arg3[%c0_17, %c0_18] : memref<128x128xbf16, #tpu.memory_space<vmem>>, vector<128x128xbf16>
    %38 = arith.truncf %36 : vector<256x128xf32> to vector<256x128xbf16>
    %cst_19 = arith.constant dense<0.000000e+00> : vector<256x128xf32>
    %39 = tpu.matmul %38, %37, %cst_19 {dimension_numbers = #tpu.dot_dimension_numbers<[1], [0], [0], [1], [0, 0, 1, 1], [], []>} : vector<256x128xbf16>, vector<128x128xbf16>, vector<256x128xf32> -> vector<256x128xf32>
    %c0_20 = arith.constant 0 : index
    %c0_21 = arith.constant 0 : index
    %40 = vector.load %arg6[%c0_20, %c0_21] : memref<1x128xf32, #tpu.memory_space<vmem>>, vector<1x128xf32>
    %41 = vector.broadcast %40 : vector<1x128xf32> to vector<256x128xf32>
    %42 = arith.addf %39, %41 : vector<256x128xf32>
    %43 = math.tanh %42 : vector<256x128xf32>
    %c0_22 = arith.constant 0 : index
    %c0_23 = arith.constant 0 : index
    %44 = vector.load %arg7[%c0_22, %c0_23] : memref<256x128xf32, #tpu.memory_space<vmem>>, vector<256x128xf32>
    tpu.vector_store %arg7[%c0_22, %c0_23], %43 {strides = array<i32>} : memref<256x128xf32, #tpu.memory_space<vmem>>, vector<256x128xf32>,
    return
  }
}

</mosaic_0001>

<llo_original>
// kernel: generator_forward.1
$region0: #{generator_forward.1}
  #allocation0 [shape = 'u32[]', space=smem, size = 0x4, offset = 0x4, fixed_abs, tag = 'smem constant byte address 0x4 - core index']
  #allocation1 [shape = 'u32[144,128]{1,0:T(1,128)}', space=vmem, size = 0x12000, scoped, tag = 'internal scratch']
  %s0 = inlined_call_operand.vmem [shape: f32[256,128], index: 0, kind: input, shape index: {}]
  %s1 = inlined_call_operand.vmem [shape: bf16[128,128], index: 1, kind: input, shape index: {}]
  %s2 = inlined_call_operand.vmem [shape: bf16[128,128], index: 2, kind: input, shape index: {}]
  %s3 = inlined_call_operand.vmem [shape: bf16[128,128], index: 3, kind: input, shape index: {}]
  %s4 = inlined_call_operand.vmem [shape: f32[1,128], index: 4, kind: input, shape index: {}]
  %s5 = inlined_call_operand.vmem [shape: f32[1,128], index: 5, kind: input, shape index: {}]
  %s6 = inlined_call_operand.vmem [shape: f32[1,128], index: 6, kind: input, shape index: {}]
  %s7 = inlined_call_operand.hbm [shape: f32[256,128], index: 7, kind: output, shape index: {}]
  %s8 = sld [smem:[#allocation0]]
  $region38: #{generator_forward.1} parent=0
    _
  %s10 = ssub.s32 1, %s8
  %s11 = scalar_select 0, %s10, %s8
  $region1: #{generator_forward.1} parent=0
    #allocation2 [shape = 'u8[131072]{0}', space=vmem, size = 0x20000, scoped, tag = 'output window, operand 0, single buffered']
    #allocation3 [shape = 's32[1]{0}', space=sflag, size = 0x4, scoped, tag = 'scoped memory for generator_forward.1']
    %12 = vsyncpa [#allocation3], 0
    // Predicated region
    $region2: #{generator_forward.1} parent=1 // pred_check
      _
    $region3: #{generator_forward.1} parent=1 // pred_check_branch
      %14 = sbr.rel (0) target = $region5
    $region4: #{generator_forward.1} parent=1 // pred_region
      _
    $region5: #{generator_forward.1} parent=1 // pred_fallthru
      _
    // Predicated region
    $region6: #{generator_forward.1} parent=1 // pred_check
      _
    $region7: #{generator_forward.1} parent=1 // pred_check_branch
      %16 = sbr.rel (0) target = $region9
    $region8: #{generator_forward.1} parent=1 // pred_region
      _
    $region9: #{generator_forward.1} parent=1 // pred_fallthru
      _
    // Predicated region
    $region10: #{generator_forward.1} parent=1 // pred_check
      _
    $region11: #{generator_forward.1} parent=1 // pred_check_branch
      %18 = sbr.rel (0) target = $region13
    $region12: #{generator_forward.1} parent=1 // pred_region
      _
    $region13: #{generator_forward.1} parent=1 // pred_fallthru
      _
    // Predicated region
    $region14: #{generator_forward.1} parent=1 // pred_check
      _
    $region15: #{generator_forward.1} parent=1 // pred_check_branch
      %20 = sbr.rel (0) target = $region17
    $region16: #{generator_forward.1} parent=1 // pred_region
      _
    $region17: #{generator_forward.1} parent=1 // pred_fallthru
      _
    // Predicated region
    $region18: #{generator_forward.1} parent=1 // pred_check
      _
    $region19: #{generator_forward.1} parent=1 // pred_check_branch
      %22 = sbr.rel (0) target = $region21
    $region20: #{generator_forward.1} parent=1 // pred_region
      _
    $region21: #{generator_forward.1} parent=1 // pred_fallthru
      _
    // Predicated region
    $region22: #{generator_forward.1} parent=1 // pred_check
      _
    $region23: #{generator_forward.1} parent=1 // pred_check_branch
      %24 = sbr.rel (0) target = $region25
    $region24: #{generator_forward.1} parent=1 // pred_region
      _
    $region25: #{generator_forward.1} parent=1 // pred_fallthru
      _
    // Predicated region
    $region26: #{generator_forward.1} parent=1 // pred_check
      _
    $region27: #{generator_forward.1} parent=1 // pred_check_branch
      %26 = sbr.rel (0) target = $region29
    $region28: #{generator_forward.1} parent=1 // pred_region
      _
    $region29: #{generator_forward.1} parent=1 // pred_fallthru
      _
    %v28 = vld [vmem:[%s0] sm:$0xff]
    %v29 = vld [vmem:[%s0 + $0x8] sm:$0xff]
    %v30 = vld [vmem:[%s0 + $0x10] sm:$0xff]
    %v31 = vld [vmem:[%s0 + $0x18] sm:$0xff]
    %v32 = vld [vmem:[%s0 + $0x20] sm:$0xff]
    %v33 = vld [vmem:[%s0 + $0x28] sm:$0xff]
    %v34 = vld [vmem:[%s0 + $0x30] sm:$0xff]
    %v35 = vld [vmem:[%s0 + $0x38] sm:$0xff]
    %v36 = vld [vmem:[%s0 + $0x40] sm:$0xff]
    %v37 = vld [vmem:[%s0 + $0x48] sm:$0xff]
    %v38 = vld [vmem:[%s0 + $0x50] sm:$0xff]
    %v39 = vld [vmem:[%s0 + $0x58] sm:$0xff]
    %v40 = vld [vmem:[%s0 + $0x60] sm:$0xff]
    %v41 = vld [vmem:[%s0 + $0x68] sm:$0xff]
    %v42 = vld [vmem:[%s0 + $0x70] sm:$0xff]
    %v43 = vld [vmem:[%s0 + $0x78] sm:$0xff]
    %v44 = vld [vmem:[%s0 + $0x80] sm:$0xff]
    %v45 = vld [vmem:[%s0 + $0x88] sm:$0xff]
    %v46 = vld [vmem:[%s0 + $0x90] sm:$0xff]
    %v47 = vld [vmem:[%s0 + $0x98] sm:$0xff]
    %v48 = vld [vmem:[%s0 + $0xa0] sm:$0xff]
    %v49 = vld [vmem:[%s0 + $0xa8] sm:$0xff]
    %v50 = vld [vmem:[%s0 + $0xb0] sm:$0xff]
    %v51 = vld [vmem:[%s0 + $0xb8] sm:$0xff]
    %v52 = vld [vmem:[%s0 + $0xc0] sm:$0xff]
    %v53 = vld [vmem:[%s0 + $0xc8] sm:$0xff]
    %v54 = vld [vmem:[%s0 + $0xd0] sm:$0xff]
    %v55 = vld [vmem:[%s0 + $0xd8] sm:$0xff]
    %v56 = vld [vmem:[%s0 + $0xe0] sm:$0xff]
    %v57 = vld [vmem:[%s0 + $0xe8] sm:$0xff]
    %v58 = vld [vmem:[%s0 + $0xf0] sm:$0xff]
    %v59 = vld [vmem:[%s0 + $0xf8] sm:$0xff]
    %v60 = vld [vmem:[%s1] sm:$0xf]
    %v61 = vld [vmem:[%s1 + $0x4] sm:$0xf]
    %v62 = vld [vmem:[%s1 + $0x8] sm:$0xf]
    %v63 = vld [vmem:[%s1 + $0xc] sm:$0xf]
    %v64 = vld [vmem:[%s1 + $0x10] sm:$0xf]
    %v65 = vld [vmem:[%s1 + $0x14] sm:$0xf]
    %v66 = vld [vmem:[%s1 + $0x18] sm:$0xf]
    %v67 = vld [vmem:[%s1 + $0x1c] sm:$0xf]
    %v68 = vld [vmem:[%s1 + $0x20] sm:$0xf]
    %v69 = vld [vmem:[%s1 + $0x24] sm:$0xf]
    %v70 = vld [vmem:[%s1 + $0x28] sm:$0xf]
    %v71 = vld [vmem:[%s1 + $0x2c] sm:$0xf]
    %v72 = vld [vmem:[%s1 + $0x30] sm:$0xf]
    %v73 = vld [vmem:[%s1 + $0x34] sm:$0xf]
    %v74 = vld [vmem:[%s1 + $0x38] sm:$0xf]
    %v75 = vld [vmem:[%s1 + $0x3c] sm:$0xf]
    %v76 = vpack.c.bf16 %v29, %v28
    %v77 = vpack.c.bf16 %v31, %v30
    %v78 = vpack.c.bf16 %v33, %v32
    %v79 = vpack.c.bf16 %v35, %v34
    %v80 = vpack.c.bf16 %v37, %v36
    %v81 = vpack.c.bf16 %v39, %v38
    %v82 = vpack.c.bf16 %v41, %v40
    %v83 = vpack.c.bf16 %v43, %v42
    %v84 = vpack.c.bf16 %v45, %v44
    %v85 = vpack.c.bf16 %v47, %v46
    %v86 = vpack.c.bf16 %v49, %v48
    %v87 = vpack.c.bf16 %v51, %v50
    %v88 = vpack.c.bf16 %v53, %v52
    %v89 = vpack.c.bf16 %v55, %v54
    %v90 = vpack.c.bf16 %v57, %v56
    %v91 = vpack.c.bf16 %v59, %v58
    %v92 = vld [vmem:[%s4] sm:$0x1]
    %v94 = vlaneseq
    %v95 = vshrl.u32 %v94, 7
    %v96 = vsub.s32 0, %v95
    %v97 = vrot.slane %v92, %v96
    %v115 = vunpack.c.l.b16 %v60
    %v116 = vunpack.c.l.b16 %v61
    %v117 = vunpack.c.l.b16 %v62
    %v118 = vunpack.c.l.b16 %v63
    %v119 = vunpack.c.l.b16 %v64
    %v120 = vunpack.c.l.b16 %v65
    %v121 = vunpack.c.l.b16 %v66
    %v122 = vunpack.c.l.b16 %v67
    %v123 = vunpack.c.l.b16 %v68
    %v124 = vunpack.c.l.b16 %v69
    %v125 = vunpack.c.l.b16 %v70
    %v126 = vunpack.c.l.b16 %v71
    %v127 = vunpack.c.l.b16 %v72
    %v128 = vunpack.c.l.b16 %v73
    %v129 = vunpack.c.l.b16 %v74
    %v130 = vunpack.c.l.b16 %v75
    %v131 = vpack.c.b16 %v116, %v115
    %v132 = vpack.c.b16 %v118, %v117
    %v133 = vpack.c.b16 %v120, %v119
    %v134 = vpack.c.b16 %v122, %v121
    %v135 = vpack.c.b16 %v124, %v123
    %v136 = vpack.c.b16 %v126, %v125
    %v137 = vpack.c.b16 %v128, %v127
    %v138 = vpack.c.b16 %v130, %v129
    %147 = vmatprep.subr.bf16.mxu0 0
    %148 = vmatpush1.bf16.msra.mxu0 %v131
    %149 = vmatprep.subr.bf16.mxu0 0
    %150 = vmatpush1.bf16.msra.mxu0 %v132
    %151 = vmatprep.subr.bf16.mxu0 0
    %152 = vmatpush1.bf16.msra.mxu0 %v133
    %153 = vmatprep.subr.bf16.mxu0 0
    %154 = vmatpush1.bf16.msra.mxu0 %v134
    %155 = vmatprep.subr.bf16.mxu0 0
    %156 = vmatpush1.bf16.msra.mxu0 %v135
    %157 = vmatprep.subr.bf16.mxu0 0
    %158 = vmatpush1.bf16.msra.mxu0 %v136
    %159 = vmatprep.subr.bf16.mxu0 0
    %160 = vmatpush1.bf16.msra.mxu0 %v137
    %161 = vmatprep.subr.bf16.mxu0 0
    %162 = vmatpush1.bf16.msra.mxu0 %v138
    %163 = vmatprep.subr.bf16.mxu0 0
    %164 = vmatpush1.bf16.msra.mxu0 0
    %165 = vmatprep.subr.bf16.mxu0 0
    %166 = vmatpush1.bf16.msra.mxu0 0
    %167 = vmatprep.subr.bf16.mxu0 0
    %168 = vmatpush1.bf16.msra.mxu0 0
    %169 = vmatprep.subr.bf16.mxu0 0
    %170 = vmatpush1.bf16.msra.mxu0 0
    %171 = vmatprep.subr.bf16.mxu0 0
    %172 = vmatpush1.bf16.msra.mxu0 0
    %173 = vmatprep.subr.bf16.mxu0 0
    %174 = vmatpush1.bf16.msra.mxu0 0
    %175 = vmatprep.subr.bf16.mxu0 0
    %176 = vmatpush1.bf16.msra.mxu0 0
    %177 = vmatprep.subr.bf16.mxu0 0
    %178 = vmatpush1.bf16.msra.mxu0 0
    %179 = vmatprep.mubr.bf16.mxu0 0
    %180 = vmatmul.mubr.bf16.gmra.mrb[0].mxu0 %v76
    %v181 = vpop.f32.mrb[0].mxu0
    %v182 = vadd.f32 %v97, %v181
    %v183 = vpop.f32.mrb[0].mxu0
    %v184 = vpop.f32.mrb[0].mxu0
    %v185 = vadd.f32 %v97, %v184
    %v186 = vpop.f32.mrb[0].mxu0
    %187 = vmatprep.mubr.bf16.mxu0 0
    %188 = vmatmul.mubr.bf16.gmra.mrb[0].mxu0 %v77
    %v189 = vpop.f32.mrb[0].mxu0
    %v190 = vadd.f32 %v97, %v189
    %v191 = vpop.f32.mrb[0].mxu0
    %v192 = vpop.f32.mrb[0].mxu0
    %v193 = vadd.f32 %v97, %v192
    %v194 = vpop.f32.mrb[0].mxu0
    %195 = vmatprep.mubr.bf16.mxu0 0
    %196 = vmatmul.mubr.bf16.gmra.mrb[0].mxu0 %v78
    %v197 = vpop.f32.mrb[0].mxu0
    %v198 = vadd.f32 %v97, %v197
    %v199 = vpop.f32.mrb[0].mxu0
    %v200 = vpop.f32.mrb[0].mxu0
    %v201 = vadd.f32 %v97, %v200
    %v202 = vpop.f32.mrb[0].mxu0
    %203 = vmatprep.mubr.bf16.mxu0 0
    %204 = vmatmul.mubr.bf16.gmra.mrb[0].mxu0 %v79
    %v205 = vpop.f32.mrb[0].mxu0
    %v206 = vadd.f32 %v97, %v205
    %v207 = vpop.f32.mrb[0].mxu0
    %v208 = vpop.f32.mrb[0].mxu0
    %v209 = vadd.f32 %v97, %v208
    %v210 = vpop.f32.mrb[0].mxu0
    %211 = vmatprep.mubr.bf16.mxu0 0
    %212 = vmatmul.mubr.bf16.gmra.mrb[0].mxu0 %v80
    %v213 = vpop.f32.mrb[0].mxu0
    %v214 = vadd.f32 %v97, %v213
    %v215 = vpop.f32.mrb[0].mxu0
    %v216 = vpop.f32.mrb[0].mxu0
    %v217 = vadd.f32 %v97, %v216
    %v218 = vpop.f32.mrb[0].mxu0
    %219 = vmatprep.mubr.bf16.mxu0 0
    %220 = vmatmul.mubr.bf16.gmra.mrb[0].mxu0 %v81
    %v221 = vpop.f32.mrb[0].mxu0
    %v222 = vadd.f32 %v97, %v221
    %v223 = vpop.f32.mrb[0].mxu0
    %v224 = vpop.f32.mrb[0].mxu0
    %v225 = vadd.f32 %v97, %v224
    %v226 = vpop.f32.mrb[0].mxu0
    %227 = vmatprep.mubr.bf16.mxu0 0
    %228 = vmatmul.mubr.bf16.gmra.mrb[0].mxu0 %v82
    %v229 = vpop.f32.mrb[0].mxu0
    %v230 = vadd.f32 %v97, %v229
    %v231 = vpop.f32.mrb[0].mxu0
    %v232 = vpop.f32.mrb[0].mxu0
    %v233 = vadd.f32 %v97, %v232
    %v234 = vpop.f32.mrb[0].mxu0
    %235 = vmatprep.mubr.bf16.mxu0 0
    %236 = vmatmul.mubr.bf16.gmra.mrb[0].mxu0 %v83
    %v237 = vpop.f32.mrb[0].mxu0
    %v238 = vadd.f32 %v97, %v237
    %v239 = vpop.f32.mrb[0].mxu0
    %v240 = vpop.f32.mrb[0].mxu0
    %v241 = vadd.f32 %v97, %v240
    %v242 = vpop.f32.mrb[0].mxu0
    %243 = vmatprep.mubr.bf16.mxu0 0
    %244 = vmatmul.mubr.bf16.gmra.mrb[0].mxu0 %v84
    %v245 = vpop.f32.mrb[0].mxu0
    %v246 = vadd.f32 %v97, %v245
    %v247 = vpop.f32.mrb[0].mxu0
    %v248 = vpop.f32.mrb[0].mxu0
    %v249 = vadd.f32 %v97, %v248
    %v250 = vpop.f32.mrb[0].mxu0
    %251 = vmatprep.mubr.bf16.mxu0 0
    %252 = vmatmul.mubr.bf16.gmra.mrb[0].mxu0 %v85
    %v253 = vpop.f32.mrb[0].mxu0
    %v254 = vadd.f32 %v97, %v253
    %v255 = vpop.f32.mrb[0].mxu0
    %v256 = vpop.f32.mrb[0].mxu0
    %v257 = vadd.f32 %v97, %v256
    %v258 = vpop.f32.mrb[0].mxu0
    %259 = vmatprep.mubr.bf16.mxu0 0
    %260 = vmatmul.mubr.bf16.gmra.mrb[0].mxu0 %v86
    %v261 = vpop.f32.mrb[0].mxu0
    %v262 = vadd.f32 %v97, %v261
    %v263 = vpop.f32.mrb[0].mxu0
    %v264 = vpop.f32.mrb[0].mxu0
    %v265 = vadd.f32 %v97, %v264
    %v266 = vpop.f32.mrb[0].mxu0
    %267 = vmatprep.mubr.bf16.mxu0 0
    %268 = vmatmul.mubr.bf16.gmra.mrb[0].mxu0 %v87
    %v269 = vpop.f32.mrb[0].mxu0
    %v270 = vadd.f32 %v97, %v269
    %v271 = vpop.f32.mrb[0].mxu0
    %v272 = vpop.f32.mrb[0].mxu0
    %v273 = vadd.f32 %v97, %v272
    %v274 = vpop.f32.mrb[0].mxu0
    %275 = vmatprep.mubr.bf16.mxu0 0
    %276 = vmatmul.mubr.bf16.gmra.mrb[0].mxu0 %v88
    %v277 = vpop.f32.mrb[0].mxu0
    %v278 = vadd.f32 %v97, %v277
    %v279 = vpop.f32.mrb[0].mxu0
    %v280 = vpop.f32.mrb[0].mxu0
    %v281 = vadd.f32 %v97, %v280
    %v282 = vpop.f32.mrb[0].mxu0
    %283 = vmatprep.mubr.bf16.mxu0 0
    %284 = vmatmul.mubr.bf16.gmra.mrb[0].mxu0 %v89
    %v285 = vpop.f32.mrb[0].mxu0
    %v286 = vadd.f32 %v97, %v285
    %v287 = vpop.f32.mrb[0].mxu0
    %v288 = vpop.f32.mrb[0].mxu0
    %v289 = vadd.f32 %v97, %v288
    %v290 = vpop.f32.mrb[0].mxu0
    %291 = vmatprep.mubr.bf16.mxu0 0
    %292 = vmatmul.mubr.bf16.gmra.mrb[0].mxu0 %v90
    %v293 = vpop.f32.mrb[0].mxu0
    %v294 = vadd.f32 %v97, %v293
    %v295 = vpop.f32.mrb[0].mxu0
    %v296 = vpop.f32.mrb[0].mxu0
    %v297 = vadd.f32 %v97, %v296
    %v298 = vpop.f32.mrb[0].mxu0
    %299 = vmatprep.mubr.bf16.mxu0 0
    %300 = vmatmul.mubr.bf16.gmra.mrb[0].mxu0 %v91
    %v301 = vpop.f32.mrb[0].mxu0
    %v302 = vadd.f32 %v97, %v301
    %v303 = vpop.f32.mrb[0].mxu0
    %v304 = vpop.f32.mrb[0].mxu0
    %v305 = vadd.f32 %v97, %v304
    %v306 = vpop.f32.mrb[0].mxu0
    %307 = vdwg.mxu0
    %v308 = vmul.f32 %v182, 0.2
    %v309 = vmul.f32 %v185, 0.2
    %v310 = vmul.f32 %v190, 0.2
    %v311 = vmul.f32 %v193, 0.2
    %v312 = vmul.f32 %v198, 0.2
    %v313 = vmul.f32 %v201, 0.2
    %v314 = vmul.f32 %v206, 0.2
    %v315 = vmul.f32 %v209, 0.2
    %v316 = vmul.f32 %v214, 0.2
    %v317 = vmul.f32 %v217, 0.2
    %v318 = vmul.f32 %v222, 0.2
    %v319 = vmul.f32 %v225, 0.2
    %v320 = vmul.f32 %v230, 0.2
    %v321 = vmul.f32 %v233, 0.2
    %v322 = vmul.f32 %v238, 0.2
    %v323 = vmul.f32 %v241, 0.2
    %v324 = vmul.f32 %v246, 0.2
    %v325 = vmul.f32 %v249, 0.2
    %v326 = vmul.f32 %v254, 0.2
    %v327 = vmul.f32 %v257, 0.2
    %v328 = vmul.f32 %v262, 0.2
    %v329 = vmul.f32 %v265, 0.2
    %v330 = vmul.f32 %v270, 0.2
    %v331 = vmul.f32 %v273, 0.2
    %v332 = vmul.f32 %v278, 0.2
    %v333 = vmul.f32 %v281, 0.2
    %v334 = vmul.f32 %v286, 0.2
    %v335 = vmul.f32 %v289, 0.2
    %v336 = vmul.f32 %v294, 0.2
    %v337 = vmul.f32 %v297, 0.2
    %v338 = vmul.f32 %v302, 0.2
    %v339 = vmul.f32 %v305, 0.2
    %v340 = vmax.f32 %v182, %v308
    %v341 = vmax.f32 %v185, %v309
    %v342 = vmax.f32 %v190, %v310
    %v343 = vmax.f32 %v193, %v311
    %v344 = vmax.f32 %v198, %v312
    %v345 = vmax.f32 %v201, %v313
    %v346 = vmax.f32 %v206, %v314
    %v347 = vmax.f32 %v209, %v315
    %v348 = vmax.f32 %v214, %v316
    %v349 = vmax.f32 %v217, %v317
    %v350 = vmax.f32 %v222, %v318
    %v351 = vmax.f32 %v225, %v319
    %v352 = vmax.f32 %v230, %v320
    %v353 = vmax.f32 %v233, %v321
    %v354 = vmax.f32 %v238, %v322
    %v355 = vmax.f32 %v241, %v323
    %v356 = vmax.f32 %v246, %v324
    %v357 = vmax.f32 %v249, %v325
    %v358 = vmax.f32 %v254, %v326
    %v359 = vmax.f32 %v257, %v327
    %v360 = vmax.f32 %v262, %v328
    %v361 = vmax.f32 %v265, %v329
    %v362 = vmax.f32 %v270, %v330
    %v363 = vmax.f32 %v273, %v331
    %v364 = vmax.f32 %v278, %v332
    %v365 = vmax.f32 %v281, %v333
    %v366 = vmax.f32 %v286, %v334
    %v367 = vmax.f32 %v289, %v335
    %v368 = vmax.f32 %v294, %v336
    %v369 = vmax.f32 %v297, %v337
    %v370 = vmax.f32 %v302, %v338
    %v371 = vmax.f32 %v305, %v339
    %v372 = vld [vmem:[%s2] sm:$0xf]
    %v373 = vld [vmem:[%s2 + $0x4] sm:$0xf]
    %v374 = vld [vmem:[%s2 + $0x8] sm:$0xf]
    %v375 = vld [vmem:[%s2 + $0xc] sm:$0xf]
    %v376 = vld [vmem:[%s2 + $0x10] sm:$0xf]
    %v377 = vld [vmem:[%s2 + $0x14] sm:$0xf]
    %v378 = vld [vmem:[%s2 + $0x18] sm:$0xf]
    %v379 = vld [vmem:[%s2 + $0x1c] sm:$0xf]
    %v380 = vld [vmem:[%s2 + $0x20] sm:$0xf]
    %v381 = vld [vmem:[%s2 + $0x24] sm:$0xf]
    %v382 = vld [vmem:[%s2 + $0x28] sm:$0xf]
    %v383 = vld [vmem:[%s2 + $0x2c] sm:$0xf]
    %v384 = vld [vmem:[%s2 + $0x30] sm:$0xf]
    %v385 = vld [vmem:[%s2 + $0x34] sm:$0xf]
    %v386 = vld [vmem:[%s2 + $0x38] sm:$0xf]
    %v387 = vld [vmem:[%s2 + $0x3c] sm:$0xf]
    %v388 = vpack.c.bf16 %v341, %v340
    %v389 = vpack.c.bf16 %v343, %v342
    %v390 = vpack.c.bf16 %v345, %v344
    %v391 = vpack.c.bf16 %v347, %v346
    %v392 = vpack.c.bf16 %v349, %v348
    %v393 = vpack.c.bf16 %v351, %v350
    %v394 = vpack.c.bf16 %v353, %v352
    %v395 = vpack.c.bf16 %v355, %v354
    %v396 = vpack.c.bf16 %v357, %v356
    %v397 = vpack.c.bf16 %v359, %v358
    %v398 = vpack.c.bf16 %v361, %v360
    %v399 = vpack.c.bf16 %v363, %v362
    %v400 = vpack.c.bf16 %v365, %v364
    %v401 = vpack.c.bf16 %v367, %v366
    %v402 = vpack.c.bf16 %v369, %v368
    %v403 = vpack.c.bf16 %v371, %v370
    %v404 = vld [vmem:[%s5] sm:$0x1]
    %v406 = vlaneseq
    %v407 = vshrl.u32 %v406, 7
    %v408 = vsub.s32 0, %v407
    %v409 = vrot.slane %v404, %v408
    %v427 = vunpack.c.l.b16 %v372
    %v428 = vunpack.c.l.b16 %v373
    %v429 = vunpack.c.l.b16 %v374
    %v430 = vunpack.c.l.b16 %v375
    %v431 = vunpack.c.l.b16 %v376
    %v432 = vunpack.c.l.b16 %v377
    %v433 = vunpack.c.l.b16 %v378
    %v434 = vunpack.c.l.b16 %v379
    %v435 = vunpack.c.l.b16 %v380
    %v436 = vunpack.c.l.b16 %v381
    %v437 = vunpack.c.l.b16 %v382
    %v438 = vunpack.c.l.b16 %v383
    %v439 = vunpack.c.l.b16 %v384
    %v440 = vunpack.c.l.b16 %v385
    %v441 = vunpack.c.l.b16 %v386
    %v442 = vunpack.c.l.b16 %v387
    %v443 = vpack.c.b16 %v428, %v427
    %v444 = vpack.c.b16 %v430, %v429
    %v445 = vpack.c.b16 %v432, %v431
    %v446 = vpack.c.b16 %v434, %v433
    %v447 = vpack.c.b16 %v436, %v435
    %v448 = vpack.c.b16 %v438, %v437
    %v449 = vpack.c.b16 %v440, %v439
    %v450 = vpack.c.b16 %v442, %v441
    %459 = vmatprep.subr.bf16.mxu0 0
    %460 = vmatpush1.bf16.msra.mxu0 %v443
    %461 = vmatprep.subr.bf16.mxu0 0
    %462 = vmatpush1.bf16.msra.mxu0 %v444
    %463 = vmatprep.subr.bf16.mxu0 0
    %464 = vmatpush1.bf16.msra.mxu0 %v445
    %465 = vmatprep.subr.bf16.mxu0 0
    %466 = vmatpush1.bf16.msra.mxu0 %v446
    %467 = vmatprep.subr.bf16.mxu0 0
    %468 = vmatpush1.bf16.msra.mxu0 %v447
    %469 = vmatprep.subr.bf16.mxu0 0
    %470 = vmatpush1.bf16.msra.mxu0 %v448
    %471 = vmatprep.subr.bf16.mxu0 0
    %472 = vmatpush1.bf16.msra.mxu0 %v449
    %473 = vmatprep.subr.bf16.mxu0 0
    %474 = vmatpush1.bf16.msra.mxu0 %v450
    %475 = vmatprep.subr.bf16.mxu0 0
    %476 = vmatpush1.bf16.msra.mxu0 0
    %477 = vmatprep.subr.bf16.mxu0 0
    %478 = vmatpush1.bf16.msra.mxu0 0
    %479 = vmatprep.subr.bf16.mxu0 0
    %480 = vmatpush1.bf16.msra.mxu0 0
    %481 = vmatprep.subr.bf16.mxu0 0
    %482 = vmatpush1.bf16.msra.mxu0 0
    %483 = vmatprep.subr.bf16.mxu0 0
    %484 = vmatpush1.bf16.msra.mxu0 0
    %485 = vmatprep.subr.bf16.mxu0 0
    %486 = vmatpush1.bf16.msra.mxu0 0
    %487 = vmatprep.subr.bf16.mxu0 0
    %488 = vmatpush1.bf16.msra.mxu0 0
    %489 = vmatprep.subr.bf16.mxu0 0
    %490 = vmatpush1.bf16.msra.mxu0 0
    %491 = vmatprep.mubr.bf16.mxu0 0
    %492 = vmatmul.mubr.bf16.gmra.mrb[0].mxu0 %v388
    %v493 = vpop.f32.mrb[0].mxu0
    %v494 = vadd.f32 %v409, %v493
    %v495 = vpop.f32.mrb[0].mxu0
    %v496 = vpop.f32.mrb[0].mxu0
    %v497 = vadd.f32 %v409, %v496
    %v498 = vpop.f32.mrb[0].mxu0
    %499 = vmatprep.mubr.bf16.mxu0 0
    %500 = vmatmul.mubr.bf16.gmra.mrb[0].mxu0 %v389
    %v501 = vpop.f32.mrb[0].mxu0
    %v502 = vadd.f32 %v409, %v501
    %v503 = vpop.f32.mrb[0].mxu0
    %v504 = vpop.f32.mrb[0].mxu0
    %v505 = vadd.f32 %v409, %v504
    %v506 = vpop.f32.mrb[0].mxu0
    %507 = vmatprep.mubr.bf16.mxu0 0
    %508 = vmatmul.mubr.bf16.gmra.mrb[0].mxu0 %v390
    %v509 = vpop.f32.mrb[0].mxu0
    %v510 = vadd.f32 %v409, %v509
    %v511 = vpop.f32.mrb[0].mxu0
    %v512 = vpop.f32.mrb[0].mxu0
    %v513 = vadd.f32 %v409, %v512
    %v514 = vpop.f32.mrb[0].mxu0
    %515 = vmatprep.mubr.bf16.mxu0 0
    %516 = vmatmul.mubr.bf16.gmra.mrb[0].mxu0 %v391
    %v517 = vpop.f32.mrb[0].mxu0
    %v518 = vadd.f32 %v409, %v517
    %v519 = vpop.f32.mrb[0].mxu0
    %v520 = vpop.f32.mrb[0].mxu0
    %v521 = vadd.f32 %v409, %v520
    %v522 = vpop.f32.mrb[0].mxu0
    %523 = vmatprep.mubr.bf16.mxu0 0
    %524 = vmatmul.mubr.bf16.gmra.mrb[0].mxu0 %v392
    %v525 = vpop.f32.mrb[0].mxu0
    %v526 = vadd.f32 %v409, %v525
    %v527 = vpop.f32.mrb[0].mxu0
    %v528 = vpop.f32.mrb[0].mxu0
    %v529 = vadd.f32 %v409, %v528
    %v530 = vpop.f32.mrb[0].mxu0
    %531 = vmatprep.mubr.bf16.mxu0 0
    %532 = vmatmul.mubr.bf16.gmra.mrb[0].mxu0 %v393
    %v533 = vpop.f32.mrb[0].mxu0
    %v534 = vadd.f32 %v409, %v533
    %v535 = vpop.f32.mrb[0].mxu0
    %v536 = vpop.f32.mrb[0].mxu0
    %v537 = vadd.f32 %v409, %v536
    %v538 = vpop.f32.mrb[0].mxu0
    %539 = vmatprep.mubr.bf16.mxu0 0
    %540 = vmatmul.mubr.bf16.gmra.mrb[0].mxu0 %v394
    %v541 = vpop.f32.mrb[0].mxu0
    %v542 = vadd.f32 %v409, %v541
    %v543 = vpop.f32.mrb[0].mxu0
    %v544 = vpop.f32.mrb[0].mxu0
    %v545 = vadd.f32 %v409, %v544
    %v546 = vpop.f32.mrb[0].mxu0
    %547 = vmatprep.mubr.bf16.mxu0 0
    %548 = vmatmul.mubr.bf16.gmra.mrb[0].mxu0 %v395
    %v549 = vpop.f32.mrb[0].mxu0
    %v550 = vadd.f32 %v409, %v549
    %v551 = vpop.f32.mrb[0].mxu0
    %v552 = vpop.f32.mrb[0].mxu0
    %v553 = vadd.f32 %v409, %v552
    %v554 = vpop.f32.mrb[0].mxu0
    %555 = vmatprep.mubr.bf16.mxu0 0
    %556 = vmatmul.mubr.bf16.gmra.mrb[0].mxu0 %v396
    %v557 = vpop.f32.mrb[0].mxu0
    %v558 = vadd.f32 %v409, %v557
    %v559 = vpop.f32.mrb[0].mxu0
    %v560 = vpop.f32.mrb[0].mxu0
    %v561 = vadd.f32 %v409, %v560
    %v562 = vpop.f32.mrb[0].mxu0
    %563 = vmatprep.mubr.bf16.mxu0 0
    %564 = vmatmul.mubr.bf16.gmra.mrb[0].mxu0 %v397
    %v565 = vpop.f32.mrb[0].mxu0
    %v566 = vadd.f32 %v409, %v565
    %v567 = vpop.f32.mrb[0].mxu0
    %v568 = vpop.f32.mrb[0].mxu0
    %v569 = vadd.f32 %v409, %v568
    %v570 = vpop.f32.mrb[0].mxu0
    %571 = vmatprep.mubr.bf16.mxu0 0
    %572 = vmatmul.mubr.bf16.gmra.mrb[0].mxu0 %v398
    %v573 = vpop.f32.mrb[0].mxu0
    %v574 = vadd.f32 %v409, %v573
    %v575 = vpop.f32.mrb[0].mxu0
    %v576 = vpop.f32.mrb[0].mxu0
    %v577 = vadd.f32 %v409, %v576
    %v578 = vpop.f32.mrb[0].mxu0
    %579 = vmatprep.mubr.bf16.mxu0 0
    %580 = vmatmul.mubr.bf16.gmra.mrb[0].mxu0 %v399
    %v581 = vpop.f32.mrb[0].mxu0
    %v582 = vadd.f32 %v409, %v581
    %v583 = vpop.f32.mrb[0].mxu0
    %v584 = vpop.f32.mrb[0].mxu0
    %v585 = vadd.f32 %v409, %v584
    %v586 = vpop.f32.mrb[0].mxu0
    %587 = vmatprep.mubr.bf16.mxu0 0
    %588 = vmatmul.mubr.bf16.gmra.mrb[0].mxu0 %v400
    %v589 = vpop.f32.mrb[0].mxu0
    %v590 = vadd.f32 %v409, %v589
    %v591 = vpop.f32.mrb[0].mxu0
    %v592 = vpop.f32.mrb[0].mxu0
    %v593 = vadd.f32 %v409, %v592
    %v594 = vpop.f32.mrb[0].mxu0
    %595 = vmatprep.mubr.bf16.mxu0 0
    %596 = vmatmul.mubr.bf16.gmra.mrb[0].mxu0 %v401
    %v597 = vpop.f32.mrb[0].mxu0
    %v598 = vadd.f32 %v409, %v597
    %v599 = vpop.f32.mrb[0].mxu0
    %v600 = vpop.f32.mrb[0].mxu0
    %v601 = vadd.f32 %v409, %v600
    %v602 = vpop.f32.mrb[0].mxu0
    %603 = vmatprep.mubr.bf16.mxu0 0
    %604 = vmatmul.mubr.bf16.gmra.mrb[0].mxu0 %v402
    %v605 = vpop.f32.mrb[0].mxu0
    %v606 = vadd.f32 %v409, %v605
    %v607 = vpop.f32.mrb[0].mxu0
    %v608 = vpop.f32.mrb[0].mxu0
    %v609 = vadd.f32 %v409, %v608
    %v610 = vpop.f32.mrb[0].mxu0
    %611 = vmatprep.mubr.bf16.mxu0 0
    %612 = vmatmul.mubr.bf16.gmra.mrb[0].mxu0 %v403
    %v613 = vpop.f32.mrb[0].mxu0
    %v614 = vadd.f32 %v409, %v613
    %v615 = vpop.f32.mrb[0].mxu0
    %v616 = vpop.f32.mrb[0].mxu0
    %v617 = vadd.f32 %v409, %v616
    %v618 = vpop.f32.mrb[0].mxu0
    %619 = vdwg.mxu0
    %v620 = vadd.f32 %v494, %v497
    %v621 = vadd.f32 %v620, %v502
    %v622 = vadd.f32 %v621, %v505
    %v623 = vadd.f32 %v622, %v510
    %v624 = vadd.f32 %v623, %v513
    %v625 = vadd.f32 %v624, %v518
    %v626 = vadd.f32 %v625, %v521
    %v627 = vadd.f32 %v626, %v526
    %v628 = vadd.f32 %v627, %v529
    %v629 = vadd.f32 %v628, %v534
    %v630 = vadd.f32 %v629, %v537
    %v631 = vadd.f32 %v630, %v542
    %v632 = vadd.f32 %v631, %v545
    %v633 = vadd.f32 %v632, %v550
    %v634 = vadd.f32 %v633, %v553
    %v635 = vadd.f32 %v634, %v558
    %v636 = vadd.f32 %v635, %v561
    %v637 = vadd.f32 %v636, %v566
    %v638 = vadd.f32 %v637, %v569
    %v639 = vadd.f32 %v638, %v574
    %v640 = vadd.f32 %v639, %v577
    %v641 = vadd.f32 %v640, %v582
    %v642 = vadd.f32 %v641, %v585
    %v643 = vadd.f32 %v642, %v590
    %v644 = vadd.f32 %v643, %v593
    %v645 = vadd.f32 %v644, %v598
    %v646 = vadd.f32 %v645, %v601
    %v647 = vadd.f32 %v646, %v606
    %v648 = vadd.f32 %v647, %v609
    %v649 = vadd.f32 %v648, %v614
    %v650 = vadd.f32 %v649, %v617
    %v651 = vrot.slane %v650, 4
    %v652 = vadd.f32 %v650, %v651
    %v653 = vrot.slane %v652, 2
    %v654 = vadd.f32 %v652, %v653
    %v655 = vrot.slane %v654, 1
    %v656 = vadd.f32 %v654, %v655
    %v657 = vrcp.pop 256.0
    %v658 = vmul.f32 %v656, %v657
    %v659 = vmul.f32 %v494, %v494
    %v660 = vmul.f32 %v497, %v497
    %v661 = vmul.f32 %v502, %v502
    %v662 = vmul.f32 %v505, %v505
    %v663 = vmul.f32 %v510, %v510
    %v664 = vmul.f32 %v513, %v513
    %v665 = vmul.f32 %v518, %v518
    %v666 = vmul.f32 %v521, %v521
    %v667 = vmul.f32 %v526, %v526
    %v668 = vmul.f32 %v529, %v529
    %v669 = vmul.f32 %v534, %v534
    %v670 = vmul.f32 %v537, %v537
    %v671 = vmul.f32 %v542, %v542
    %v672 = vmul.f32 %v545, %v545
    %v673 = vmul.f32 %v550, %v550
    %v674 = vmul.f32 %v553, %v553
    %v675 = vmul.f32 %v558, %v558
    %v676 = vmul.f32 %v561, %v561
    %v677 = vmul.f32 %v566, %v566
    %v678 = vmul.f32 %v569, %v569
    %v679 = vmul.f32 %v574, %v574
    %v680 = vmul.f32 %v577, %v577
    %v681 = vmul.f32 %v582, %v582
    %v682 = vmul.f32 %v585, %v585
    %v683 = vmul.f32 %v590, %v590
    %v684 = vmul.f32 %v593, %v593
    %v685 = vmul.f32 %v598, %v598
    %v686 = vmul.f32 %v601, %v601
    %v687 = vmul.f32 %v606, %v606
    %v688 = vmul.f32 %v609, %v609
    %v689 = vmul.f32 %v614, %v614
    %v690 = vmul.f32 %v617, %v617
    %v691 = vadd.f32 %v659, %v660
    %v692 = vadd.f32 %v691, %v661
    %v693 = vadd.f32 %v692, %v662
    %v694 = vadd.f32 %v693, %v663
    %v695 = vadd.f32 %v694, %v664
    %v696 = vadd.f32 %v695, %v665
    %v697 = vadd.f32 %v696, %v666
    %v698 = vadd.f32 %v697, %v667
    %v699 = vadd.f32 %v698, %v668
    %v700 = vadd.f32 %v699, %v669
    %v701 = vadd.f32 %v700, %v670
    %v702 = vadd.f32 %v701, %v671
    %v703 = vadd.f32 %v702, %v672
    %v704 = vadd.f32 %v703, %v673
    %v705 = vadd.f32 %v704, %v674
    %v706 = vadd.f32 %v705, %v675
    %v707 = vadd.f32 %v706, %v676
    %v708 = vadd.f32 %v707, %v677
    %v709 = vadd.f32 %v708, %v678
    %v710 = vadd.f32 %v709, %v679
    %v711 = vadd.f32 %v710, %v680
    %v712 = vadd.f32 %v711, %v681
    %v713 = vadd.f32 %v712, %v682
    %v714 = vadd.f32 %v713, %v683
    %v715 = vadd.f32 %v714, %v684
    %v716 = vadd.f32 %v715, %v685
    %v717 = vadd.f32 %v716, %v686
    %v718 = vadd.f32 %v717, %v687
    %v719 = vadd.f32 %v718, %v688
    %v720 = vadd.f32 %v719, %v689
    %v721 = vadd.f32 %v720, %v690
    %v722 = vrot.slane %v721, 4
    %v723 = vadd.f32 %v721, %v722
    %v724 = vrot.slane %v723, 2
    %v725 = vadd.f32 %v723, %v724
    %v726 = vrot.slane %v725, 1
    %v727 = vadd.f32 %v725, %v726
    %v728 = vmul.f32 %v727, %v657
    %v729 = vsub.f32 %v494, %v658
    %v730 = vsub.f32 %v497, %v658
    %v731 = vsub.f32 %v502, %v658
    %v732 = vsub.f32 %v505, %v658
    %v733 = vsub.f32 %v510, %v658
    %v734 = vsub.f32 %v513, %v658
    %v735 = vsub.f32 %v518, %v658
    %v736 = vsub.f32 %v521, %v658
    %v737 = vsub.f32 %v526, %v658
    %v738 = vsub.f32 %v529, %v658
    %v739 = vsub.f32 %v534, %v658
    %v740 = vsub.f32 %v537, %v658
    %v741 = vsub.f32 %v542, %v658
    %v742 = vsub.f32 %v545, %v658
    %v743 = vsub.f32 %v550, %v658
    %v744 = vsub.f32 %v553, %v658
    %v745 = vsub.f32 %v558, %v658
    %v746 = vsub.f32 %v561, %v658
    %v747 = vsub.f32 %v566, %v658
    %v748 = vsub.f32 %v569, %v658
    %v749 = vsub.f32 %v574, %v658
    %v750 = vsub.f32 %v577, %v658
    %v751 = vsub.f32 %v582, %v658
    %v752 = vsub.f32 %v585, %v658
    %v753 = vsub.f32 %v590, %v658
    %v754 = vsub.f32 %v593, %v658
    %v755 = vsub.f32 %v598, %v658
    %v756 = vsub.f32 %v601, %v658
    %v757 = vsub.f32 %v606, %v658
    %v758 = vsub.f32 %v609, %v658
    %v759 = vsub.f32 %v614, %v658
    %v760 = vsub.f32 %v617, %v658
    %v761 = vmul.f32 %v658, %v658
    %v762 = vsub.f32 %v728, %v761
    %v763 = vadd.f32 %v762, 1e-05
    %v764 = vrsqrt.pop %v763
    %v765 = vmul.f32 %v729, %v764
    %v766 = vmul.f32 %v730, %v764
    %v767 = vmul.f32 %v731, %v764
    %v768 = vmul.f32 %v732, %v764
    %v769 = vmul.f32 %v733, %v764
    %v770 = vmul.f32 %v734, %v764
    %v771 = vmul.f32 %v735, %v764
    %v772 = vmul.f32 %v736, %v764
    %v773 = vmul.f32 %v737, %v764
    %v774 = vmul.f32 %v738, %v764
    %v775 = vmul.f32 %v739, %v764
    %v776 = vmul.f32 %v740, %v764
    %v777 = vmul.f32 %v741, %v764
    %v778 = vmul.f32 %v742, %v764
    %v779 = vmul.f32 %v743, %v764
    %v780 = vmul.f32 %v744, %v764
    %v781 = vmul.f32 %v745, %v764
    %v782 = vmul.f32 %v746, %v764
    %v783 = vmul.f32 %v747, %v764
    %v784 = vmul.f32 %v748, %v764
    %v785 = vmul.f32 %v749, %v764
    %v786 = vmul.f32 %v750, %v764
    %v787 = vmul.f32 %v751, %v764
    %v788 = vmul.f32 %v752, %v764
    %v789 = vmul.f32 %v753, %v764
    %v790 = vmul.f32 %v754, %v764
    %v791 = vmul.f32 %v755, %v764
    %v792 = vmul.f32 %v756, %v764
    %v793 = vmul.f32 %v757, %v764
    %v794 = vmul.f32 %v758, %v764
    %v795 = vmul.f32 %v759, %v764
    %v796 = vmul.f32 %v760, %v764
    %v797 = vmul.f32 %v765, 0.2
    %v798 = vmul.f32 %v766, 0.2
    %v799 = vmul.f32 %v767, 0.2
    %v800 = vmul.f32 %v768, 0.2
    %v801 = vmul.f32 %v769, 0.2
    %v802 = vmul.f32 %v770, 0.2
    %v803 = vmul.f32 %v771, 0.2
    %v804 = vmul.f32 %v772, 0.2
    %v805 = vmul.f32 %v773, 0.2
    %v806 = vmul.f32 %v774, 0.2
    %v807 = vmul.f32 %v775, 0.2
    %v808 = vmul.f32 %v776, 0.2
    %v809 = vmul.f32 %v777, 0.2
    %v810 = vmul.f32 %v778, 0.2
    %v811 = vmul.f32 %v779, 0.2
    %v812 = vmul.f32 %v780, 0.2
    %v813 = vmul.f32 %v781, 0.2
    %v814 = vmul.f32 %v782, 0.2
    %v815 = vmul.f32 %v783, 0.2
    %v816 = vmul.f32 %v784, 0.2
    %v817 = vmul.f32 %v785, 0.2
    %v818 = vmul.f32 %v786, 0.2
    %v819 = vmul.f32 %v787, 0.2
    %v820 = vmul.f32 %v788, 0.2
    %v821 = vmul.f32 %v789, 0.2
    %v822 = vmul.f32 %v790, 0.2
    %v823 = vmul.f32 %v791, 0.2
    %v824 = vmul.f32 %v792, 0.2
    %v825 = vmul.f32 %v793, 0.2
    %v826 = vmul.f32 %v794, 0.2
    %v827 = vmul.f32 %v795, 0.2
    %v828 = vmul.f32 %v796, 0.2
    %v829 = vmax.f32 %v765, %v797
    %v830 = vmax.f32 %v766, %v798
    %v831 = vmax.f32 %v767, %v799
    %v832 = vmax.f32 %v768, %v800
    %v833 = vmax.f32 %v769, %v801
    %v834 = vmax.f32 %v770, %v802
    %v835 = vmax.f32 %v771, %v803
    %v836 = vmax.f32 %v772, %v804
    %v837 = vmax.f32 %v773, %v805
    %v838 = vmax.f32 %v774, %v806
    %v839 = vmax.f32 %v775, %v807
    %v840 = vmax.f32 %v776, %v808
    %v841 = vmax.f32 %v777, %v809
    %v842 = vmax.f32 %v778, %v810
    %v843 = vmax.f32 %v779, %v811
    %v844 = vmax.f32 %v780, %v812
    %v845 = vmax.f32 %v781, %v813
    %v846 = vmax.f32 %v782, %v814
    %v847 = vmax.f32 %v783, %v815
    %v848 = vmax.f32 %v784, %v816
    %v849 = vmax.f32 %v785, %v817
    %v850 = vmax.f32 %v786, %v818
    %v851 = vmax.f32 %v787, %v819
    %v852 = vmax.f32 %v788, %v820
    %v853 = vmax.f32 %v789, %v821
    %v854 = vmax.f32 %v790, %v822
    %v855 = vmax.f32 %v791, %v823
    %v856 = vmax.f32 %v792, %v824
    %v857 = vmax.f32 %v793, %v825
    %v858 = vmax.f32 %v794, %v826
    %v859 = vmax.f32 %v795, %v827
    %v860 = vmax.f32 %v796, %v828
    %v861 = vld [vmem:[%s3] sm:$0xf]
    %v862 = vld [vmem:[%s3 + $0x4] sm:$0xf]
    %v863 = vld [vmem:[%s3 + $0x8] sm:$0xf]
    %v864 = vld [vmem:[%s3 + $0xc] sm:$0xf]
    %v865 = vld [vmem:[%s3 + $0x10] sm:$0xf]
    %v866 = vld [vmem:[%s3 + $0x14] sm:$0xf]
    %v867 = vld [vmem:[%s3 + $0x18] sm:$0xf]
    %v868 = vld [vmem:[%s3 + $0x1c] sm:$0xf]
    %v869 = vld [vmem:[%s3 + $0x20] sm:$0xf]
    %v870 = vld [vmem:[%s3 + $0x24] sm:$0xf]
    %v871 = vld [vmem:[%s3 + $0x28] sm:$0xf]
    %v872 = vld [vmem:[%s3 + $0x2c] sm:$0xf]
    %v873 = vld [vmem:[%s3 + $0x30] sm:$0xf]
    %v874 = vld [vmem:[%s3 + $0x34] sm:$0xf]
    %v875 = vld [vmem:[%s3 + $0x38] sm:$0xf]
    %v876 = vld [vmem:[%s3 + $0x3c] sm:$0xf]
    %v877 = vpack.c.bf16 %v830, %v829
    %v878 = vpack.c.bf16 %v832, %v831
    %v879 = vpack.c.bf16 %v834, %v833
    %v880 = vpack.c.bf16 %v836, %v835
    %v881 = vpack.c.bf16 %v838, %v837
    %v882 = vpack.c.bf16 %v840, %v839
    %v883 = vpack.c.bf16 %v842, %v841
    %v884 = vpack.c.bf16 %v844, %v843
    %v885 = vpack.c.bf16 %v846, %v845
    %v886 = vpack.c.bf16 %v848, %v847
    %v887 = vpack.c.bf16 %v850, %v849
    %v888 = vpack.c.bf16 %v852, %v851
    %v889 = vpack.c.bf16 %v854, %v853
    %v890 = vpack.c.bf16 %v856, %v855
    %v891 = vpack.c.bf16 %v858, %v857
    %v892 = vpack.c.bf16 %v860, %v859
    %v893 = vld [vmem:[%s6] sm:$0x1]
    %v895 = vlaneseq
    %v896 = vshrl.u32 %v895, 7
    %v897 = vsub.s32 0, %v896
    %v898 = vrot.slane %v893, %v897
    %v916 = vunpack.c.l.b16 %v861
    %v917 = vunpack.c.l.b16 %v862
    %v918 = vunpack.c.l.b16 %v863
    %v919 = vunpack.c.l.b16 %v864
    %v920 = vunpack.c.l.b16 %v865
    %v921 = vunpack.c.l.b16 %v866
    %v922 = vunpack.c.l.b16 %v867
    %v923 = vunpack.c.l.b16 %v868
    %v924 = vunpack.c.l.b16 %v869
    %v925 = vunpack.c.l.b16 %v870
    %v926 = vunpack.c.l.b16 %v871
    %v927 = vunpack.c.l.b16 %v872
    %v928 = vunpack.c.l.b16 %v873
    %v929 = vunpack.c.l.b16 %v874
    %v930 = vunpack.c.l.b16 %v875
    %v931 = vunpack.c.l.b16 %v876
    %v932 = vpack.c.b16 %v917, %v916
    %v933 = vpack.c.b16 %v919, %v918
    %v934 = vpack.c.b16 %v921, %v920
    %v935 = vpack.c.b16 %v923, %v922
    %v936 = vpack.c.b16 %v925, %v924
    %v937 = vpack.c.b16 %v927, %v926
    %v938 = vpack.c.b16 %v929, %v928
    %v939 = vpack.c.b16 %v931, %v930
    %948 = vmatprep.subr.bf16.mxu0 0
    %949 = vmatpush1.bf16.msra.mxu0 %v932
    %950 = vmatprep.subr.bf16.mxu0 0
    %951 = vmatpush1.bf16.msra.mxu0 %v933
    %952 = vmatprep.subr.bf16.mxu0 0
    %953 = vmatpush1.bf16.msra.mxu0 %v934
    %954 = vmatprep.subr.bf16.mxu0 0
    %955 = vmatpush1.bf16.msra.mxu0 %v935
    %956 = vmatprep.subr.bf16.mxu0 0
    %957 = vmatpush1.bf16.msra.mxu0 %v936
    %958 = vmatprep.subr.bf16.mxu0 0
    %959 = vmatpush1.bf16.msra.mxu0 %v937
    %960 = vmatprep.subr.bf16.mxu0 0
    %961 = vmatpush1.bf16.msra.mxu0 %v938
    %962 = vmatprep.subr.bf16.mxu0 0
    %963 = vmatpush1.bf16.msra.mxu0 %v939
    %964 = vmatprep.subr.bf16.mxu0 0
    %965 = vmatpush1.bf16.msra.mxu0 0
    %966 = vmatprep.subr.bf16.mxu0 0
    %967 = vmatpush1.bf16.msra.mxu0 0
    %968 = vmatprep.subr.bf16.mxu0 0
    %969 = vmatpush1.bf16.msra.mxu0 0
    %970 = vmatprep.subr.bf16.mxu0 0
    %971 = vmatpush1.bf16.msra.mxu0 0
    %972 = vmatprep.subr.bf16.mxu0 0
    %973 = vmatpush1.bf16.msra.mxu0 0
    %974 = vmatprep.subr.bf16.mxu0 0
    %975 = vmatpush1.bf16.msra.mxu0 0
    %976 = vmatprep.subr.bf16.mxu0 0
    %977 = vmatpush1.bf16.msra.mxu0 0
    %978 = vmatprep.subr.bf16.mxu0 0
    %979 = vmatpush1.bf16.msra.mxu0 0
    %980 = vmatprep.mubr.bf16.mxu0 0
    %981 = vmatmul.mubr.bf16.gmra.mrb[0].mxu0 %v877
    %v982 = vpop.f32.mrb[0].mxu0
    %v983 = vadd.f32 %v898, %v982
    %v984 = vpop.f32.mrb[0].mxu0
    %v985 = vpop.f32.mrb[0].mxu0
    %v986 = vadd.f32 %v898, %v985
    %v987 = vpop.f32.mrb[0].mxu0
    %988 = vmatprep.mubr.bf16.mxu0 0
    %989 = vmatmul.mubr.bf16.gmra.mrb[0].mxu0 %v878
    %v990 = vpop.f32.mrb[0].mxu0
    %v991 = vadd.f32 %v898, %v990
    %v992 = vpop.f32.mrb[0].mxu0
    %v993 = vpop.f32.mrb[0].mxu0
    %v994 = vadd.f32 %v898, %v993
    %v995 = vpop.f32.mrb[0].mxu0
    %996 = vmatprep.mubr.bf16.mxu0 0
    %997 = vmatmul.mubr.bf16.gmra.mrb[0].mxu0 %v879
    %v998 = vpop.f32.mrb[0].mxu0
    %v999 = vadd.f32 %v898, %v998
    %v1000 = vpop.f32.mrb[0].mxu0
    %v1001 = vpop.f32.mrb[0].mxu0
    %v1002 = vadd.f32 %v898, %v1001
    %v1003 = vpop.f32.mrb[0].mxu0
    %1004 = vmatprep.mubr.bf16.mxu0 0
    %1005 = vmatmul.mubr.bf16.gmra.mrb[0].mxu0 %v880
    %v1006 = vpop.f32.mrb[0].mxu0
    %v1007 = vadd.f32 %v898, %v1006
    %v1008 = vpop.f32.mrb[0].mxu0
    %v1009 = vpop.f32.mrb[0].mxu0
    %v1010 = vadd.f32 %v898, %v1009
    %v1011 = vpop.f32.mrb[0].mxu0
    %1012 = vmatprep.mubr.bf16.mxu0 0
    %1013 = vmatmul.mubr.bf16.gmra.mrb[0].mxu0 %v881
    %v1014 = vpop.f32.mrb[0].mxu0
    %v1015 = vadd.f32 %v898, %v1014
    %v1016 = vpop.f32.mrb[0].mxu0
    %v1017 = vpop.f32.mrb[0].mxu0
    %v1018 = vadd.f32 %v898, %v1017
    %v1019 = vpop.f32.mrb[0].mxu0
    %1020 = vmatprep.mubr.bf16.mxu0 0
    %1021 = vmatmul.mubr.bf16.gmra.mrb[0].mxu0 %v882
    %v1022 = vpop.f32.mrb[0].mxu0
    %v1023 = vadd.f32 %v898, %v1022
    %v1024 = vpop.f32.mrb[0].mxu0
    %v1025 = vpop.f32.mrb[0].mxu0
    %v1026 = vadd.f32 %v898, %v1025
    %v1027 = vpop.f32.mrb[0].mxu0
    %1028 = vmatprep.mubr.bf16.mxu0 0
    %1029 = vmatmul.mubr.bf16.gmra.mrb[0].mxu0 %v883
    %v1030 = vpop.f32.mrb[0].mxu0
    %v1031 = vadd.f32 %v898, %v1030
    %v1032 = vpop.f32.mrb[0].mxu0
    %v1033 = vpop.f32.mrb[0].mxu0
    %v1034 = vadd.f32 %v898, %v1033
    %v1035 = vpop.f32.mrb[0].mxu0
    %1036 = vmatprep.mubr.bf16.mxu0 0
    %1037 = vmatmul.mubr.bf16.gmra.mrb[0].mxu0 %v884
    %v1038 = vpop.f32.mrb[0].mxu0
    %v1039 = vadd.f32 %v898, %v1038
    %v1040 = vpop.f32.mrb[0].mxu0
    %v1041 = vpop.f32.mrb[0].mxu0
    %v1042 = vadd.f32 %v898, %v1041
    %v1043 = vpop.f32.mrb[0].mxu0
    %1044 = vmatprep.mubr.bf16.mxu0 0
    %1045 = vmatmul.mubr.bf16.gmra.mrb[0].mxu0 %v885
    %v1046 = vpop.f32.mrb[0].mxu0
    %v1047 = vadd.f32 %v898, %v1046
    %v1048 = vpop.f32.mrb[0].mxu0
    %v1049 = vpop.f32.mrb[0].mxu0
    %v1050 = vadd.f32 %v898, %v1049
    %v1051 = vpop.f32.mrb[0].mxu0
    %1052 = vmatprep.mubr.bf16.mxu0 0
    %1053 = vmatmul.mubr.bf16.gmra.mrb[0].mxu0 %v886
    %v1054 = vpop.f32.mrb[0].mxu0
    %v1055 = vadd.f32 %v898, %v1054
    %v1056 = vpop.f32.mrb[0].mxu0
    %v1057 = vpop.f32.mrb[0].mxu0
    %v1058 = vadd.f32 %v898, %v1057
    %v1059 = vpop.f32.mrb[0].mxu0
    %1060 = vmatprep.mubr.bf16.mxu0 0
    %1061 = vmatmul.mubr.bf16.gmra.mrb[0].mxu0 %v887
    %v1062 = vpop.f32.mrb[0].mxu0
    %v1063 = vadd.f32 %v898, %v1062
    %v1064 = vpop.f32.mrb[0].mxu0
    %v1065 = vpop.f32.mrb[0].mxu0
    %v1066 = vadd.f32 %v898, %v1065
    %v1067 = vpop.f32.mrb[0].mxu0
    %1068 = vmatprep.mubr.bf16.mxu0 0
    %1069 = vmatmul.mubr.bf16.gmra.mrb[0].mxu0 %v888
    %v1070 = vpop.f32.mrb[0].mxu0
    %v1071 = vadd.f32 %v898, %v1070
    %v1072 = vpop.f32.mrb[0].mxu0
    %v1073 = vpop.f32.mrb[0].mxu0
    %v1074 = vadd.f32 %v898, %v1073
    %v1075 = vpop.f32.mrb[0].mxu0
    %1076 = vmatprep.mubr.bf16.mxu0 0
    %1077 = vmatmul.mubr.bf16.gmra.mrb[0].mxu0 %v889
    %v1078 = vpop.f32.mrb[0].mxu0
    %v1079 = vadd.f32 %v898, %v1078
    %v1080 = vpop.f32.mrb[0].mxu0
    %v1081 = vpop.f32.mrb[0].mxu0
    %v1082 = vadd.f32 %v898, %v1081
    %v1083 = vpop.f32.mrb[0].mxu0
    %1084 = vmatprep.mubr.bf16.mxu0 0
    %1085 = vmatmul.mubr.bf16.gmra.mrb[0].mxu0 %v890
    %v1086 = vpop.f32.mrb[0].mxu0
    %v1087 = vadd.f32 %v898, %v1086
    %v1088 = vpop.f32.mrb[0].mxu0
    %v1089 = vpop.f32.mrb[0].mxu0
    %v1090 = vadd.f32 %v898, %v1089
    %v1091 = vpop.f32.mrb[0].mxu0
    %1092 = vmatprep.mubr.bf16.mxu0 0
    %1093 = vmatmul.mubr.bf16.gmra.mrb[0].mxu0 %v891
    %v1094 = vpop.f32.mrb[0].mxu0
    %v1095 = vadd.f32 %v898, %v1094
    %v1096 = vpop.f32.mrb[0].mxu0
    %v1097 = vpop.f32.mrb[0].mxu0
    %v1098 = vadd.f32 %v898, %v1097
    %v1099 = vpop.f32.mrb[0].mxu0
    %1100 = vmatprep.mubr.bf16.mxu0 0
    %1101 = vmatmul.mubr.bf16.gmra.mrb[0].mxu0 %v892
    %v1102 = vpop.f32.mrb[0].mxu0
    %v1103 = vadd.f32 %v898, %v1102
    %v1104 = vpop.f32.mrb[0].mxu0
    %v1105 = vpop.f32.mrb[0].mxu0
    %v1106 = vadd.f32 %v898, %v1105
    %v1107 = vpop.f32.mrb[0].mxu0
    %1108 = vdwg.mxu0
    %v1109 = vtanh.pop %v983
    %v1110 = vtanh.pop %v986
    %v1111 = vtanh.pop %v991
    %v1112 = vtanh.pop %v994
    %v1113 = vtanh.pop %v999
    %v1114 = vtanh.pop %v1002
    %v1115 = vtanh.pop %v1007
    %v1116 = vtanh.pop %v1010
    %v1117 = vtanh.pop %v1015
    %v1118 = vtanh.pop %v1018
    %v1119 = vtanh.pop %v1023
    %v1120 = vtanh.pop %v1026
    %v1121 = vtanh.pop %v1031
    %v1122 = vtanh.pop %v1034
    %v1123 = vtanh.pop %v1039
    %v1124 = vtanh.pop %v1042
    %v1125 = vtanh.pop %v1047
    %v1126 = vtanh.pop %v1050
    %v1127 = vtanh.pop %v1055
    %v1128 = vtanh.pop %v1058
    %v1129 = vtanh.pop %v1063
    %v1130 = vtanh.pop %v1066
    %v1131 = vtanh.pop %v1071
    %v1132 = vtanh.pop %v1074
    %v1133 = vtanh.pop %v1079
    %v1134 = vtanh.pop %v1082
    %v1135 = vtanh.pop %v1087
    %v1136 = vtanh.pop %v1090
    %v1137 = vtanh.pop %v1095
    %v1138 = vtanh.pop %v1098
    %v1139 = vtanh.pop %v1103
    %v1140 = vtanh.pop %v1106
    %1141 = vst [vmem:[#allocation2] sm:$0xff] %v1109
    %1142 = vst [vmem:[#allocation2 + $0x8] sm:$0xff] %v1110
    %1143 = vst [vmem:[#allocation2 + $0x10] sm:$0xff] %v1111
    %1144 = vst [vmem:[#allocation2 + $0x18] sm:$0xff] %v1112
    %1145 = vst [vmem:[#allocation2 + $0x20] sm:$0xff] %v1113
    %1146 = vst [vmem:[#allocation2 + $0x28] sm:$0xff] %v1114
    %1147 = vst [vmem:[#allocation2 + $0x30] sm:$0xff] %v1115
    %1148 = vst [vmem:[#allocation2 + $0x38] sm:$0xff] %v1116
    %1149 = vst [vmem:[#allocation2 + $0x40] sm:$0xff] %v1117
    %1150 = vst [vmem:[#allocation2 + $0x48] sm:$0xff] %v1118
    %1151 = vst [vmem:[#allocation2 + $0x50] sm:$0xff] %v1119
    %1152 = vst [vmem:[#allocation2 + $0x58] sm:$0xff] %v1120
    %1153 = vst [vmem:[#allocation2 + $0x60] sm:$0xff] %v1121
    %1154 = vst [vmem:[#allocation2 + $0x68] sm:$0xff] %v1122
    %1155 = vst [vmem:[#allocation2 + $0x70] sm:$0xff] %v1123
    %1156 = vst [vmem:[#allocation2 + $0x78] sm:$0xff] %v1124
    %1157 = vst [vmem:[#allocation2 + $0x80] sm:$0xff] %v1125
    %1158 = vst [vmem:[#allocation2 + $0x88] sm:$0xff] %v1126
    %1159 = vst [vmem:[#allocation2 + $0x90] sm:$0xff] %v1127
    %1160 = vst [vmem:[#allocation2 + $0x98] sm:$0xff] %v1128
    %1161 = vst [vmem:[#allocation2 + $0xa0] sm:$0xff] %v1129
    %1162 = vst [vmem:[#allocation2 + $0xa8] sm:$0xff] %v1130
    %1163 = vst [vmem:[#allocation2 + $0xb0] sm:$0xff] %v1131
    %1164 = vst [vmem:[#allocation2 + $0xb8] sm:$0xff] %v1132
    %1165 = vst [vmem:[#allocation2 + $0xc0] sm:$0xff] %v1133
    %1166 = vst [vmem:[#allocation2 + $0xc8] sm:$0xff] %v1134
    %1167 = vst [vmem:[#allocation2 + $0xd0] sm:$0xff] %v1135
    %1168 = vst [vmem:[#allocation2 + $0xd8] sm:$0xff] %v1136
    %1169 = vst [vmem:[#allocation2 + $0xe0] sm:$0xff] %v1137
    %1170 = vst [vmem:[#allocation2 + $0xe8] sm:$0xff] %v1138
    %1171 = vst [vmem:[#allocation2 + $0xf0] sm:$0xff] %v1139
    %1172 = vst [vmem:[#allocation2 + $0xf8] sm:$0xff] %v1140
    // Predicated region
    $region30: #{generator_forward.1} parent=1 // pred_check
      _
    $region31: #{generator_forward.1} parent=1 // pred_check_branch
      %1174 = sbr.rel (0) target = $region33
    $region32: #{generator_forward.1} parent=1 // pred_region
      %s1176 = ssub.s32 4096, 4096
      %1177 = vsyncadd [#allocation3], %s1176
      %s1178 = sshll.u32 [#allocation2], 4
      %s1179 = int_to_ptr.vmem [resolvable:$true] %s1178
      %1184 = dma.vmem_to_hbm [thread:$0]  %s1179, 4096, %s7, [#allocation3], 128, 128, 8
    $region33: #{generator_forward.1} parent=1 // pred_fallthru
      _
    // Predicated region
    $region34: #{generator_forward.1} parent=1 // pred_check
      _
    $region35: #{generator_forward.1} parent=1 // pred_check_branch
      %1186 = sbr.rel (0) target = $region37
    $region36: #{generator_forward.1} parent=1 // pred_region
      %1187 = dma.done [#allocation3], 4096
    $region37: #{generator_forward.1} parent=1 // pred_fallthru
      _
    %1188 = vsyncpa [#allocation3], 1

</llo_original>
